<compile_context>
chip_gen: v7x
topology: tpu7x:2x2x1
jax: 0.10.0
libtpu: 0.0.40
codegen_flags: <defaults>
</compile_context>

<pallas_src>
import math
import functools

import jax
import jax.numpy as jnp
from jax.experimental import pallas as pl
from jax.experimental.pallas import tpu as pltpu


def _round_up(v, m):
    return ((v + m - 1) // m) * m


# ----------------------------------------------------------------------------
# Pallas kernel (one batch element per grid step)
# ----------------------------------------------------------------------------
def _torgb_kernel(x_ref, kdw_ref, wpm_ref, bias_ref, o_ref, *, wp_stride, n_out):
    """Per-batch-element ToRGBcr forward (lane-dense, channel-major).

    x_ref    : (C, n_in)   padded image, spatially flattened (row stride wp_stride),
                           zero-padded on the lane axis so every shifted window
                           read below stays in bounds.
    kdw_ref  : (C, 9)      depthwise 3x3 taps, column t = 3*i + j = tap (i, j)
    wpm_ref  : (Cout, C)   1x1 conv weight with the style modulation folded in
    bias_ref : (Cout, 1)   output bias
    o_ref    : (Cout, n_out) output, flattened padded-width rows (lane-dense)
    """
    # tap (0, 0) initializes the accumulator (saves a full zeros + add pass)
    acc = kdw_ref[:, 0:1] * x_ref[:, 0:n_out]
    for t in range(1, 9):
        i, j = divmod(t, 3)
        d = i * wp_stride + j
        acc = acc + kdw_ref[:, t:t + 1] * x_ref[:, d:d + n_out]

    # pointwise 1x1 conv (modulation already folded into wpm):
    # (Cout, C) @ (C, n_out) -> (Cout, n_out)   — lane-dense MXU N-dim & store
    out = jnp.dot(wpm_ref[...], acc, preferred_element_type=jnp.float32)
    out = out + bias_ref[...]
    o_ref[...] = out.astype(o_ref.dtype)


# ----------------------------------------------------------------------------
# Wrapper (glue: layout plumbing + pallas_call)
# ----------------------------------------------------------------------------
def torgb_forward_pallas(params, x, style, skip=None):
    """ToRGBcr.forward.  x: (B, C, H, W) NCHW float32, style: (B, S)."""
    B, C, H, W = x.shape
    Cout = 4
    scale = 1.0 / math.sqrt(C * 3 * 3)
    Hp, Wp = H + 2, W + 2
    Np = Hp * Wp

    n_out = _round_up(H * Wp, 128)                       # lane-dense output width
    n_in = _round_up(max(Np, n_out + 2 * Wp + 2), 128)   # slack for shifted reads

    # --- glue: hoist the modulation Linear out of the kernel and fold it into
    #           the 1x1 weight (depthwise conv is per-channel linear).
    mod = (style @ params["mod_w"].T + params["mod_b"][None, :]) * scale   # (B, C)
    wp_mat = params["weight_permute"][:, :, 0, 0]                          # (4, C)
    wpm = wp_mat[None, :, :] * mod[:, None, :]                             # (B, 4, C)

    kdw = params["weight_dw"][:, 0].reshape(C, 9)                          # (C, 9)
    bias = params["bias"][0, :, 0, 0].reshape(Cout, 1)                     # (4, 1)

    # --- glue: channel-major, spatially padded + flattened + lane-padded input
    #           (stays NCHW: no transpose, ~1x HBM traffic)
    x_pad = jnp.pad(x, ((0, 0), (0, 0), (1, 1), (1, 1)))                   # (B,C,Hp,Wp)
    xf = jnp.pad(x_pad.reshape(B, C, Np), ((0, 0), (0, 0), (0, n_in - Np)))

    kernel = functools.partial(_torgb_kernel, wp_stride=Wp, n_out=n_out)

    flops = B * (2 * 9 * C * n_out + 2 * Cout * C * n_out)
    bytes_accessed = 4 * (B * C * n_in + B * Cout * n_out
                          + C * 9 + B * Cout * C + Cout)
    vmem_limit = min(64 * 1024 * 1024,
                     max(4 * 1024 * 1024,
                         8 * 4 * (C * n_in + Cout * n_out + C * n_out)))

    out_flat = pl.pallas_call(
        kernel,
        out_shape=jax.ShapeDtypeStruct((B, Cout, n_out), x.dtype),
        grid_spec=pltpu.PrefetchScalarGridSpec(
            num_scalar_prefetch=0,
            grid=(B,),
            in_specs=[
                pl.BlockSpec((None, C, n_in), lambda b: (b, 0, 0)),
                pl.BlockSpec((C, 9), lambda b: (0, 0)),
                pl.BlockSpec((None, Cout, C), lambda b: (b, 0, 0)),
                pl.BlockSpec((Cout, 1), lambda b: (0, 0)),
            ],
            out_specs=pl.BlockSpec((None, Cout, n_out), lambda b: (b, 0, 0)),
        ),
        compiler_params=pltpu.CompilerParams(
            dimension_semantics=("parallel",),        # batch elems independent
            vmem_limit_bytes=vmem_limit),
        cost_estimate=pl.CostEstimate(
            flops=flops, transcendentals=0, bytes_accessed=bytes_accessed),
    )(xf, kdw, wpm, bias)

    # glue: drop the 2 junk (padding) columns per flattened row -> NCHW output
    out = out_flat[:, :, :H * Wp].reshape(B, Cout, H, Wp)[:, :, :, :W]

    if skip is not None:
        # TODO(synk): skip-path bilinear 2x upsample (align_corners=True) kept
        # as plain-JAX glue; it is not the hot path of this module.
        out = out + _upsample_bilinear_2x_align_corners(skip)
    return out


def _upsample_bilinear_2x_align_corners(x):
    """nn.UpsamplingBilinear2d(scale_factor=2) on NCHW (align_corners=True)."""
    B, C, H, W = x.shape
    Ho, Wo = 2 * H, 2 * W

    def coords(n_in, n_out):
        if n_in == 1:
            z = jnp.zeros((n_out,), jnp.float32)
            zi = jnp.zeros((n_out,), jnp.int32)
            return z, zi, zi
        src = jnp.arange(n_out, dtype=jnp.float32) * (n_in - 1) / (n_out - 1)
        i0 = jnp.floor(src).astype(jnp.int32)
        i1 = jnp.minimum(i0 + 1, n_in - 1)
        return src - i0.astype(jnp.float32), i0, i1

    fh, h0, h1 = coords(H, Ho)
    fw, w0, w1 = coords(W, Wo)
    x00 = x[:, :, h0][:, :, :, w0]
    x01 = x[:, :, h0][:, :, :, w1]
    x10 = x[:, :, h1][:, :, :, w0]
    x11 = x[:, :, h1][:, :, :, w1]
    fh = fh[None, None, :, None]
    fw = fw[None, None, None, :]
    top = x00 * (1.0 - fw) + x01 * fw
    bot = x10 * (1.0 - fw) + x11 * fw
    return top * (1.0 - fh) + bot * fh


# ----------------------------------------------------------------------------
# Deterministic parameter init (shapes from ToRGBcr.__init__ / ModulatedDWConv2dcr)
# ----------------------------------------------------------------------------
def init_params(key, in_channel, style_dim, out_channel=4):
    k1, k2, k3 = jax.random.split(key, 3)
    return dict(
        weight_dw=jax.random.normal(k1, (in_channel, 1, 3, 3), jnp.float32),
        weight_permute=jax.random.normal(k2, (out_channel, in_channel, 1, 1),
                                         jnp.float32),
        mod_w=jax.random.normal(k3, (in_channel, style_dim), jnp.float32) * 0.1,
        mod_b=jnp.ones((in_channel,), jnp.float32),   # module fills bias with 1.0
        bias=jnp.zeros((1, out_channel, 1, 1), jnp.float32),
    )


# ----------------------------------------------------------------------------
# Pure-JAX reference (mirrors the PyTorch math, NCHW)
# ----------------------------------------------------------------------------
def torgb_forward_ref(params, x, style, skip=None):
    B, C, H, W = x.shape
    scale = 1.0 / math.sqrt(C * 9)
    mod = (style @ params["mod_w"].T + params["mod_b"][None, :]) * scale  # (B,C)
    xm = x * mod[:, :, None, None]
    xp = jnp.pad(xm, ((0, 0), (0, 0), (1, 1), (1, 1)))
    wdw = params["weight_dw"][:, 0]                                        # (C,3,3)
    y = jnp.zeros_like(xm)
    for i in range(3):
        for j in range(3):
            y = y + wdw[:, i, j][None, :, None, None] * xp[:, :, i:i + H, j:j + W]
    out = jnp.einsum("oc,bchw->bohw", params["weight_permute"][:, :, 0, 0], y)
    out = out + params["bias"]
    if skip is not None:
        out = out + _upsample_bilinear_2x_align_corners(skip)
    return out


# ----------------------------------------------------------------------------
if __name__ == "__main__":
    key = jax.random.PRNGKey(0)
    kx, ks, kp, kk = jax.random.split(key, 4)

    B, C, H, W, S = 2, 8, 16, 16, 8          # in_channel=8, style_dim=8
    x = jax.random.normal(kx, (B, C, H, W), jnp.float32)
    style = jax.random.normal(ks, (B, S), jnp.float32)
    skip = jax.random.normal(kk, (B, 4, H // 2, W // 2), jnp.float32)
    params = init_params(kp, C, S)

    run = jax.jit(lambda xx, ss: torgb_forward_pallas(params, xx, ss))
    out = jax.block_until_ready(run(x, style))

    ref = torgb_forward_ref(params, x, style)
    assert out.shape == (B, 4, H, W), out.shape
    if not jnp.allclose(out, ref, atol=1e-4, rtol=1e-4):
        raise AssertionError(
            f"mismatch, max abs err = {jnp.max(jnp.abs(out - ref))}")

    # skip-connection path
    run_skip = jax.jit(lambda xx, ss, sk: torgb_forward_pallas(params, xx, ss, sk))
    out_s = jax.block_until_ready(run_skip(x, style, skip))
    ref_s = torgb_forward_ref(params, x, style, skip)
    if not jnp.allclose(out_s, ref_s, atol=1e-4, rtol=1e-4):
        raise AssertionError(
            f"skip mismatch, max abs err = {jnp.max(jnp.abs(out_s - ref_s))}")

    print("KERNEL_OK")
</pallas_src>

<mosaic_0001>
module attributes {stable_mosaic.version = 11 : i64} {
  func.func @_torgb_kernel(%arg0: i32, %arg1: memref<1x8x512xf32, #tpu.memory_space<vmem>>, %arg2: memref<8x9xf32, #tpu.memory_space<vmem>>, %arg3: memref<1x4x8xf32, #tpu.memory_space<vmem>>, %arg4: memref<4x1xf32, #tpu.memory_space<vmem>>, %arg5: memref<1x4x384xf32, #tpu.memory_space<vmem>>) attributes {dimension_semantics = [#tpu.dimension_semantics<parallel>], iteration_bounds = array<i64: 2>, scalar_prefetch = 0 : i64, scratch_operands = 0 : i64, tpu.core_type = #tpu.core_type<tc>, window_params = [{transform_indices = @transform_0, window_bounds = array<i64: 1, 8, 512>}, {pipeline_mode = #tpu.pipeline_mode<synchronous>, transform_indices = @transform_1, window_bounds = array<i64: 8, 9>}, {transform_indices = @transform_2, window_bounds = array<i64: 1, 4, 8>}, {pipeline_mode = #tpu.pipeline_mode<synchronous>, transform_indices = @transform_3, window_bounds = array<i64: 4, 1>}, {transform_indices = @transform_4, window_bounds = array<i64: 1, 4, 384>}]} {
    %c0 = arith.constant 0 : index
    %c0_0 = arith.constant 0 : index
    %0 = vector.load %arg2[%c0, %c0_0] : memref<8x9xf32, #tpu.memory_space<vmem>>, vector<8x1xf32>
    %c0_1 = arith.constant 0 : index
    %c0_2 = arith.constant 0 : index
    %c0_3 = arith.constant 0 : index
    %1 = vector.load %arg1[%c0_1, %c0_2, %c0_3] : memref<1x8x512xf32, #tpu.memory_space<vmem>>, vector<1x8x384xf32>
    %2 = vector.shape_cast %1 : vector<1x8x384xf32> to vector<8x384xf32>
    %3 = vector.broadcast %0 : vector<8x1xf32> to vector<8x384xf32>
    %4 = arith.mulf %3, %2 : vector<8x384xf32>
    %c0_4 = arith.constant 0 : index
    %c1 = arith.constant 1 : index
    %5 = vector.load %arg2[%c0_4, %c1] : memref<8x9xf32, #tpu.memory_space<vmem>>, vector<8x1xf32>
    %c0_5 = arith.constant 0 : index
    %c0_6 = arith.constant 0 : index
    %c1_7 = arith.constant 1 : index
    %6 = vector.load %arg1[%c0_5, %c0_6, %c1_7] : memref<1x8x512xf32, #tpu.memory_space<vmem>>, vector<1x8x384xf32>
    %7 = vector.shape_cast %6 : vector<1x8x384xf32> to vector<8x384xf32>
    %8 = vector.broadcast %5 : vector<8x1xf32> to vector<8x384xf32>
    %9 = arith.mulf %8, %7 : vector<8x384xf32>
    %10 = arith.addf %4, %9 : vector<8x384xf32>
    %c0_8 = arith.constant 0 : index
    %c2 = arith.constant 2 : index
    %11 = vector.load %arg2[%c0_8, %c2] : memref<8x9xf32, #tpu.memory_space<vmem>>, vector<8x1xf32>
    %c0_9 = arith.constant 0 : index
    %c0_10 = arith.constant 0 : index
    %c2_11 = arith.constant 2 : index
    %12 = vector.load %arg1[%c0_9, %c0_10, %c2_11] : memref<1x8x512xf32, #tpu.memory_space<vmem>>, vector<1x8x384xf32>
    %13 = vector.shape_cast %12 : vector<1x8x384xf32> to vector<8x384xf32>
    %14 = vector.broadcast %11 : vector<8x1xf32> to vector<8x384xf32>
    %15 = arith.mulf %14, %13 : vector<8x384xf32>
    %16 = arith.addf %10, %15 : vector<8x384xf32>
    %c0_12 = arith.constant 0 : index
    %c3 = arith.constant 3 : index
    %17 = vector.load %arg2[%c0_12, %c3] : memref<8x9xf32, #tpu.memory_space<vmem>>, vector<8x1xf32>
    %c0_13 = arith.constant 0 : index
    %c0_14 = arith.constant 0 : index
    %c18 = arith.constant 18 : index
    %18 = vector.load %arg1[%c0_13, %c0_14, %c18] : memref<1x8x512xf32, #tpu.memory_space<vmem>>, vector<1x8x384xf32>
    %19 = vector.shape_cast %18 : vector<1x8x384xf32> to vector<8x384xf32>
    %20 = vector.broadcast %17 : vector<8x1xf32> to vector<8x384xf32>
    %21 = arith.mulf %20, %19 : vector<8x384xf32>
    %22 = arith.addf %16, %21 : vector<8x384xf32>
    %c0_15 = arith.constant 0 : index
    %c4 = arith.constant 4 : index
    %23 = vector.load %arg2[%c0_15, %c4] : memref<8x9xf32, #tpu.memory_space<vmem>>, vector<8x1xf32>
    %c0_16 = arith.constant 0 : index
    %c0_17 = arith.constant 0 : index
    %c19 = arith.constant 19 : index
    %24 = vector.load %arg1[%c0_16, %c0_17, %c19] : memref<1x8x512xf32, #tpu.memory_space<vmem>>, vector<1x8x384xf32>
    %25 = vector.shape_cast %24 : vector<1x8x384xf32> to vector<8x384xf32>
    %26 = vector.broadcast %23 : vector<8x1xf32> to vector<8x384xf32>
    %27 = arith.mulf %26, %25 : vector<8x384xf32>
    %28 = arith.addf %22, %27 : vector<8x384xf32>
    %c0_18 = arith.constant 0 : index
    %c5 = arith.constant 5 : index
    %29 = vector.load %arg2[%c0_18, %c5] : memref<8x9xf32, #tpu.memory_space<vmem>>, vector<8x1xf32>
    %c0_19 = arith.constant 0 : index
    %c0_20 = arith.constant 0 : index
    %c20 = arith.constant 20 : index
    %30 = vector.load %arg1[%c0_19, %c0_20, %c20] : memref<1x8x512xf32, #tpu.memory_space<vmem>>, vector<1x8x384xf32>
    %31 = vector.shape_cast %30 : vector<1x8x384xf32> to vector<8x384xf32>
    %32 = vector.broadcast %29 : vector<8x1xf32> to vector<8x384xf32>
    %33 = arith.mulf %32, %31 : vector<8x384xf32>
    %34 = arith.addf %28, %33 : vector<8x384xf32>
    %c0_21 = arith.constant 0 : index
    %c6 = arith.constant 6 : index
    %35 = vector.load %arg2[%c0_21, %c6] : memref<8x9xf32, #tpu.memory_space<vmem>>, vector<8x1xf32>
    %c0_22 = arith.constant 0 : index
    %c0_23 = arith.constant 0 : index
    %c36 = arith.constant 36 : index
    %36 = vector.load %arg1[%c0_22, %c0_23, %c36] : memref<1x8x512xf32, #tpu.memory_space<vmem>>, vector<1x8x384xf32>
    %37 = vector.shape_cast %36 : vector<1x8x384xf32> to vector<8x384xf32>
    %38 = vector.broadcast %35 : vector<8x1xf32> to vector<8x384xf32>
    %39 = arith.mulf %38, %37 : vector<8x384xf32>
    %40 = arith.addf %34, %39 : vector<8x384xf32>
    %c0_24 = arith.constant 0 : index
    %c7 = arith.constant 7 : index
    %41 = vector.load %arg2[%c0_24, %c7] : memref<8x9xf32, #tpu.memory_space<vmem>>, vector<8x1xf32>
    %c0_25 = arith.constant 0 : index
    %c0_26 = arith.constant 0 : index
    %c37 = arith.constant 37 : index
    %42 = vector.load %arg1[%c0_25, %c0_26, %c37] : memref<1x8x512xf32, #tpu.memory_space<vmem>>, vector<1x8x384xf32>
    %43 = vector.shape_cast %42 : vector<1x8x384xf32> to vector<8x384xf32>
    %44 = vector.broadcast %41 : vector<8x1xf32> to vector<8x384xf32>
    %45 = arith.mulf %44, %43 : vector<8x384xf32>
    %46 = arith.addf %40, %45 : vector<8x384xf32>
    %c0_27 = arith.constant 0 : index
    %c8 = arith.constant 8 : index
    %47 = vector.load %arg2[%c0_27, %c8] : memref<8x9xf32, #tpu.memory_space<vmem>>, vector<8x1xf32>
    %c0_28 = arith.constant 0 : index
    %c0_29 = arith.constant 0 : index
    %c38 = arith.constant 38 : index
    %48 = vector.load %arg1[%c0_28, %c0_29, %c38] : memref<1x8x512xf32, #tpu.memory_space<vmem>>, vector<1x8x384xf32>
    %49 = vector.shape_cast %48 : vector<1x8x384xf32> to vector<8x384xf32>
    %50 = vector.broadcast %47 : vector<8x1xf32> to vector<8x384xf32>
    %51 = arith.mulf %50, %49 : vector<8x384xf32>
    %52 = arith.addf %46, %51 : vector<8x384xf32>
    %c0_30 = arith.constant 0 : index
    %c0_31 = arith.constant 0 : index
    %c0_32 = arith.constant 0 : index
    %53 = vector.load %arg3[%c0_30, %c0_31, %c0_32] : memref<1x4x8xf32, #tpu.memory_space<vmem>>, vector<1x4x8xf32>
    %54 = vector.shape_cast %53 : vector<1x4x8xf32> to vector<4x8xf32>
    %cst = arith.constant dense<0.000000e+00> : vector<4x384xf32>
    %55 = tpu.matmul %54, %52, %cst {dimension_numbers = #tpu.dot_dimension_numbers<[1], [0], [0], [1], [0, 0, 1, 1], [], []>} : vector<4x8xf32>, vector<8x384xf32>, vector<4x384xf32> -> vector<4x384xf32>
    %c0_33 = arith.constant 0 : index
    %c0_34 = arith.constant 0 : index
    %56 = vector.load %arg4[%c0_33, %c0_34] : memref<4x1xf32, #tpu.memory_space<vmem>>, vector<4x1xf32>
    %57 = vector.broadcast %56 : vector<4x1xf32> to vector<4x384xf32>
    %58 = arith.addf %55, %57 : vector<4x384xf32>
    %c0_35 = arith.constant 0 : index
    %c0_36 = arith.constant 0 : index
    %c0_37 = arith.constant 0 : index
    %59 = vector.load %arg5[%c0_35, %c0_36, %c0_37] : memref<1x4x384xf32, #tpu.memory_space<vmem>>, vector<1x4x384xf32>
    %60 = vector.shape_cast %59 : vector<1x4x384xf32> to vector<4x384xf32>
    %61 = vector.shape_cast %58 : vector<4x384xf32> to vector<1x4x384xf32>
    tpu.vector_store %arg5[%c0_35, %c0_36, %c0_37], %61 {strides = array<i32>} : memref<1x4x384xf32, #tpu.memory_space<vmem>>, vector<1x4x384xf32>,
    return
  }
  func.func @transform_0(%arg0: i32) -> (i32, i32, i32) {
    %c0_i32 = arith.constant 0 : i32
    %c0_i32_0 = arith.constant 0 : i32
    %c0_i32_1 = arith.constant 0 : i32
    return %arg0, %c0_i32, %c0_i32_0 : i32, i32, i32
  }
  func.func @transform_1(%arg0: i32) -> (i32, i32) {
    %c0_i32 = arith.constant 0 : i32
    %c0_i32_0 = arith.constant 0 : i32
    %c0_i32_1 = arith.constant 0 : i32
    return %c0_i32, %c0_i32_0 : i32, i32
  }
  func.func @transform_2(%arg0: i32) -> (i32, i32, i32) {
    %c0_i32 = arith.constant 0 : i32
    %c0_i32_0 = arith.constant 0 : i32
    %c0_i32_1 = arith.constant 0 : i32
    return %arg0, %c0_i32, %c0_i32_0 : i32, i32, i32
  }
  func.func @transform_3(%arg0: i32) -> (i32, i32) {
    %c0_i32 = arith.constant 0 : i32
    %c0_i32_0 = arith.constant 0 : i32
    %c0_i32_1 = arith.constant 0 : i32
    return %c0_i32, %c0_i32_0 : i32, i32
  }
  func.func @transform_4(%arg0: i32) -> (i32, i32, i32) {
    %c0_i32 = arith.constant 0 : i32
    %c0_i32_0 = arith.constant 0 : i32
    %c0_i32_1 = arith.constant 0 : i32
    return %arg0, %c0_i32, %c0_i32_0 : i32, i32, i32
  }
}

</mosaic_0001>

<llo_original>
// kernel: _lambda_.1
$region0: #{_lambda_.1}
  #allocation0 [shape = 'u32[]', space=smem, size = 0x4, offset = 0x4, fixed_abs, tag = 'smem constant byte address 0x4 - core index']
  #allocation1 [shape = 'u32[144,128]{1,0:T(1,128)}', space=vmem, size = 0x12000, scoped, tag = 'internal scratch']
  %s0 = inlined_call_operand.vmem [shape: f32[2,8,512], index: 0, kind: input, shape index: {}]
  %s1 = inlined_call_operand.vmem [shape: f32[8,9], index: 1, kind: input, shape index: {}]
  %s2 = inlined_call_operand.vmem [shape: f32[2,4,8], index: 2, kind: input, shape index: {}]
  %s3 = inlined_call_operand.vmem [shape: f32[4,1], index: 3, kind: input, shape index: {}]
  %s4 = inlined_call_operand.vmem [shape: f32[2,4,384], index: 4, kind: output, shape index: {}]
  %s5 = sld [smem:[#allocation0]]
  $region49: #{_lambda_.1} parent=0
    _
  %s7 = ssub.s32 1, %s5
  %s8 = scalar_select 0, %s7, %s5
  loop: start=0, step=1, limit=4
  $region2: #{_lambda_.1} parent=0 // loop_pre_header
    _
  $region3: #{_lambda_.1} parent=0 // loop_header
    %s10 = sphi 0, %s14
    %p11 = scmp.ge.s32.totalorder %s10, 4
    %s20 = sphi 0, %s22
    %s23 = sphi 0, %s20
    %s24 = sphi 0, %s23
    %s40 = sphi 0, %s24
    %s44 = sphi 0, %s44
    %s46 = sphi 0, %s44
    %s47 = sphi 0, %s46
    %s61 = sphi 0, %s47
    %s67 = sphi 0, %s69
    %s70 = sphi 0, %s67
    %s71 = sphi 0, %s70
    %s87 = sphi 0, %s71
    %s91 = sphi 0, %s91
    %s93 = sphi 0, %s91
    %s94 = sphi 0, %s93
    %s108 = sphi 0, %s94
    %s114 = sphi 0, %s116
    %s117 = sphi 0, %s114
    %s118 = sphi 0, %s117
    %s134 = sphi 0, %s118
  $region4: #{_lambda_.1} parent=0 // loop_header_branch
    %13 = sbr.rel (%p11) target = $region8
  $region5: #{_lambda_.1} parent=0 // loop_body
    %s15 = ssub.s32 %s10, 1
    %s16 = ssub.s32 %s10, 2
    %s17 = sadd.s32 %s10, 1
    %s18 = ssub.s32 %s10, %s17
    %p19 = scmp.eq.s32.totalorder %s18, 0
    %s21 = sadd.s32 %s20, 1
    %s22 = scalar_select %p19, %s20, %s21
    %p25 = pneg %p19
    %p26 = scmp.eq.s32.totalorder %s10, 1
    %p27 = por %p25, %p26
    %p28 = scmp.ne.s32.totalorder %s20, %s23
    %p29 = scmp.eq.s32.totalorder %s10, 0
    %p30 = por %p28, %p29
    %p31 = scmp.ne.s32.totalorder %s20, %s23
    %p32 = scmp.eq.s32.totalorder %s15, 1
    %p33 = por %p31, %p32
    %p34 = scmp.ne.s32.totalorder %s23, %s24
    %p35 = scmp.eq.s32.totalorder %s15, 0
    %p36 = por %p34, %p35
    %p37 = scmp.ne.s32.totalorder %s23, %s24
    %p38 = scmp.eq.s32.totalorder %s16, 1
    %p39 = por %p37, %p38
    %p41 = scmp.ne.s32.totalorder %s24, %s40
    %p42 = scmp.eq.s32.totalorder %s16, 0
    %p43 = por %p41, %p42
    %s45 = sadd.s32 %s44, 1
    %p48 = scmp.eq.s32.totalorder %s10, 1
    %p49 = scmp.ne.s32.totalorder %s44, %s46
    %p50 = scmp.eq.s32.totalorder %s10, 0
    %p51 = por %p49, %p50
    %p52 = scmp.ne.s32.totalorder %s44, %s46
    %p53 = scmp.eq.s32.totalorder %s15, 1
    %p54 = por %p52, %p53
    %p55 = scmp.ne.s32.totalorder %s46, %s47
    %p56 = scmp.eq.s32.totalorder %s15, 0
    %p57 = por %p55, %p56
    %p58 = scmp.ne.s32.totalorder %s46, %s47
    %p59 = scmp.eq.s32.totalorder %s16, 1
    %p60 = por %p58, %p59
    %p62 = scmp.ne.s32.totalorder %s47, %s61
    %p63 = scmp.eq.s32.totalorder %s16, 0
    %p64 = por %p62, %p63
    %s65 = ssub.s32 %s10, %s17
    %p66 = scmp.eq.s32.totalorder %s65, 0
    %s68 = sadd.s32 %s67, 1
    %s69 = scalar_select %p66, %s67, %s68
    %p72 = pneg %p66
    %p73 = scmp.eq.s32.totalorder %s10, 1
    %p74 = por %p72, %p73
    %p75 = scmp.ne.s32.totalorder %s67, %s70
    %p76 = scmp.eq.s32.totalorder %s10, 0
    %p77 = por %p75, %p76
    %p78 = scmp.ne.s32.totalorder %s67, %s70
    %p79 = scmp.eq.s32.totalorder %s15, 1
    %p80 = por %p78, %p79
    %p81 = scmp.ne.s32.totalorder %s70, %s71
    %p82 = scmp.eq.s32.totalorder %s15, 0
    %p83 = por %p81, %p82
    %p84 = scmp.ne.s32.totalorder %s70, %s71
    %p85 = scmp.eq.s32.totalorder %s16, 1
    %p86 = por %p84, %p85
    %p88 = scmp.ne.s32.totalorder %s71, %s87
    %p89 = scmp.eq.s32.totalorder %s16, 0
    %p90 = por %p88, %p89
    %s92 = sadd.s32 %s91, 1
    %p95 = scmp.eq.s32.totalorder %s10, 1
    %p96 = scmp.ne.s32.totalorder %s91, %s93
    %p97 = scmp.eq.s32.totalorder %s10, 0
    %p98 = por %p96, %p97
    %p99 = scmp.ne.s32.totalorder %s91, %s93
    %p100 = scmp.eq.s32.totalorder %s15, 1
    %p101 = por %p99, %p100
    %p102 = scmp.ne.s32.totalorder %s93, %s94
    %p103 = scmp.eq.s32.totalorder %s15, 0
    %p104 = por %p102, %p103
    %p105 = scmp.ne.s32.totalorder %s93, %s94
    %p106 = scmp.eq.s32.totalorder %s16, 1
    %p107 = por %p105, %p106
    %p109 = scmp.ne.s32.totalorder %s94, %s108
    %p110 = scmp.eq.s32.totalorder %s16, 0
    %p111 = por %p109, %p110
    %s112 = ssub.s32 %s10, %s17
    %p113 = scmp.eq.s32.totalorder %s112, 0
    %s115 = sadd.s32 %s114, 1
    %s116 = scalar_select %p113, %s114, %s115
    %p119 = pneg %p113
    %p120 = scmp.eq.s32.totalorder %s10, 1
    %p121 = por %p119, %p120
    %p122 = scmp.ne.s32.totalorder %s114, %s117
    %p123 = scmp.eq.s32.totalorder %s10, 0
    %p124 = por %p122, %p123
    %p125 = scmp.ne.s32.totalorder %s114, %s117
    %p126 = scmp.eq.s32.totalorder %s15, 1
    %p127 = por %p125, %p126
    %p128 = scmp.ne.s32.totalorder %s117, %s118
    %p129 = scmp.eq.s32.totalorder %s15, 0
    %p130 = por %p128, %p129
    %p131 = scmp.ne.s32.totalorder %s117, %s118
    %p132 = scmp.eq.s32.totalorder %s16, 1
    %p133 = por %p131, %p132
    %p135 = scmp.ne.s32.totalorder %s118, %s134
    %p136 = scmp.eq.s32.totalorder %s16, 0
    %p137 = por %p135, %p136
    %p138 = scmp.le.s32.totalorder 1, %s10
    %p139 = scmp.lt.s32.totalorder %s10, 3
    %p140 = pnand %p138, %p139
    %p141 = pneg %p140
    // Predicated region
    $region9: #{_lambda_.1} parent=5 // pred_check
      _
    $region10: #{_lambda_.1} parent=5 // pred_check_branch
      %143 = sbr.rel (%p140) target = $region12
    $region11: #{_lambda_.1} parent=5 // pred_region
      %s144 = ssub.s32 %s10, 1
      // Predicated region
      $region13: #{_lambda_.1} parent=11 // pred_check
        %p145 = pneg %p57
      $region14: #{_lambda_.1} parent=11 // pred_check_branch
        %147 = sbr.rel (%p145) target = $region16
      $region15: #{_lambda_.1} parent=11 // pred_region
        _
      $region16: #{_lambda_.1} parent=11 // pred_fallthru
        _
      // Predicated region
      $region17: #{_lambda_.1} parent=11 // pred_check
        %p148 = pneg %p104
      $region18: #{_lambda_.1} parent=11 // pred_check_branch
        %150 = sbr.rel (%p148) target = $region20
      $region19: #{_lambda_.1} parent=11 // pred_region
        _
      $region20: #{_lambda_.1} parent=11 // pred_fallthru
        _
    $region12: #{_lambda_.1} parent=5 // pred_fallthru
      _
    %p151 = scmp.lt.s32.totalorder %s10, 2
    // Predicated region
    $region21: #{_lambda_.1} parent=5 // pred_check
      %p152 = pneg %p151
    $region22: #{_lambda_.1} parent=5 // pred_check_branch
      %154 = sbr.rel (%p152) target = $region24
    $region23: #{_lambda_.1} parent=5 // pred_region
      // Predicated region
      $region25: #{_lambda_.1} parent=23 // pred_check
        %p155 = pneg %p30
      $region26: #{_lambda_.1} parent=23 // pred_check_branch
        %157 = sbr.rel (%p155) target = $region28
      $region27: #{_lambda_.1} parent=23 // pred_region
        %p158 = scmp.lt.s32.totalorder %s10, 1
        %s159 = scalar_select %p158, %s10, 1
        %s160 = smul.addr %s159, 4
        %s161 = smul.addr %s160, 8
        %s162 = scalar_lea.vmem %s0, %s161
      $region28: #{_lambda_.1} parent=23 // pred_fallthru
        _
      // Predicated region
      $region29: #{_lambda_.1} parent=23 // pred_check
        %p163 = pneg %p77
      $region30: #{_lambda_.1} parent=23 // pred_check_branch
        %165 = sbr.rel (%p163) target = $region32
      $region31: #{_lambda_.1} parent=23 // pred_region
        %p166 = scmp.lt.s32.totalorder %s10, 1
        %s167 = scalar_select %p166, %s10, 1
        %s168 = smul.addr %s167, 4
        %s169 = scalar_lea.vmem %s2, %s168
      $region32: #{_lambda_.1} parent=23 // pred_fallthru
        _
    $region24: #{_lambda_.1} parent=5 // pred_fallthru
      _
    %p170 = scmp.le.s32.totalorder 1, %s10
    %p171 = scmp.lt.s32.totalorder %s10, 3
    %p172 = pnand %p170, %p171
    %p173 = pneg %p172
    // Predicated region
    $region33: #{_lambda_.1} parent=5 // pred_check
      _
    $region34: #{_lambda_.1} parent=5 // pred_check_branch
      %175 = sbr.rel (%p172) target = $region36
    $region35: #{_lambda_.1} parent=5 // pred_region
      %s176 = ssub.s32 %s10, 1
      %p177 = scmp.lt.s32.totalorder %s15, 1
      %s178 = scalar_select %p177, %s15, 1
      %s179 = smul.addr %s178, 4
      %s180 = smul.addr %s179, 8
      %s181 = scalar_lea.vmem %s0, %s180
      %p182 = pneg %p36
      %p183 = pneg %p33
      %p184 = pneg %p57
      %p185 = pneg %p54
      %p186 = scmp.lt.s32.totalorder %s15, 1
      %s187 = scalar_select %p186, %s15, 1
      %s188 = smul.addr %s187, 4
      %s189 = scalar_lea.vmem %s2, %s188
      %p190 = pneg %p83
      %p191 = pneg %p80
      %p192 = pneg %p104
      %p193 = pneg %p101
      %p194 = pneg %p130
      %p195 = pneg %p127
      %p196 = scmp.lt.s32.totalorder %s15, 1
      %s197 = scalar_select %p196, %s15, 1
      %s198 = smul.addr %s197, 3
      %s199 = smul.addr %s198, 4
      %s200 = scalar_lea.vmem %s4, %s199
      %p201 = scmp.lt.s32.totalorder %s15, 1
      %s202 = scalar_select %p201, %s15, 1
      %s203 = smul.addr %s202, 4
      %s204 = smul.addr %s203, 8
      %s205 = scalar_lea.vmem %s0, %s204
      %p206 = scmp.lt.s32.totalorder %s15, 1
      %s207 = scalar_select %p206, %s15, 1
      %s208 = smul.addr %s207, 4
      %s209 = scalar_lea.vmem %s2, %s208
      %p210 = scmp.lt.s32.totalorder %s15, 1
      %s211 = scalar_select %p210, %s15, 1
      %s212 = smul.addr %s211, 3
      %s213 = smul.addr %s212, 4
      %s214 = scalar_lea.vmem %s4, %s213
      %v215 = vld [vmem:[%s1] sm:$0xff]
      %v216 = vld [vmem:[%s205] sm:$0xff]
      %v217 = vld [vmem:[%s205 + $0x8] sm:$0xff]
      %v218 = vld [vmem:[%s205 + $0x10] sm:$0xff]
      %220 = vset.pattern.permute.xlu0 0
      %221 = vperm.xlu0 %220, %v215
      %v222 = vpop.permute.xlu0 %221
      %v224 = vmul.f32 %v222, %v216
      %v225 = vmul.f32 %v222, %v217
      %v226 = vmul.f32 %v222, %v218
      %v227 = vld [vmem:[%s205] sm:$0xff]
      %v228 = vld [vmem:[%s205 + $0x8] sm:$0xff]
      %v229 = vld [vmem:[%s205 + $0x10] sm:$0xff]
      %v230 = vld [vmem:[%s205 + $0x18] sm:$0xff]
      %231 = vset.pattern.permute.xlu0 1
      %232 = vperm.xlu0 %231, %v215
      %v233 = vpop.permute.xlu0 %232
      %v235 = vmul.f32 %v233, %v227
      %v236 = vmul.f32 %v233, %v228
      %v237 = vmul.f32 %v233, %v229
      %v238 = vmul.f32 %v233, %v230
      %243 = vrot.lane.b32.xlu0 %v235, 127
      %v244 = vpop.permute.xlu0 %243
      %245 = vrot.lane.b32.xlu0 %v236, 127
      %v246 = vpop.permute.xlu0 %245
      %247 = vrot.lane.b32.xlu0 %v237, 127
      %v248 = vpop.permute.xlu0 %247
      %249 = vrot.lane.b32.xlu0 %v238, 127
      %v250 = vpop.permute.xlu0 %249
      %vm251 = vcmask 1039360
      %v252 = vsel %vm251, %v244, %v246
      %v253 = vsel %vm251, %v246, %v248
      %v254 = vsel %vm251, %v248, %v250
      %v258 = vadd.f32 %v224, %v252
      %v259 = vadd.f32 %v225, %v253
      %v260 = vadd.f32 %v226, %v254
      %261 = vset.pattern.permute.xlu0 2
      %262 = vperm.xlu0 %261, %v215
      %v263 = vpop.permute.xlu0 %262
      %v265 = vmul.f32 %v263, %v227
      %v266 = vmul.f32 %v263, %v228
      %v267 = vmul.f32 %v263, %v229
      %v268 = vmul.f32 %v263, %v230
      %273 = vrot.lane.b32.xlu0 %v265, 126
      %v274 = vpop.permute.xlu0 %273
      %275 = vrot.lane.b32.xlu0 %v266, 126
      %v276 = vpop.permute.xlu0 %275
      %277 = vrot.lane.b32.xlu0 %v267, 126
      %v278 = vpop.permute.xlu0 %277
      %279 = vrot.lane.b32.xlu0 %v268, 126
      %v280 = vpop.permute.xlu0 %279
      %vm281 = vcmask 1031168
      %v282 = vsel %vm281, %v274, %v276
      %v283 = vsel %vm281, %v276, %v278
      %v284 = vsel %vm281, %v278, %v280
      %v288 = vadd.f32 %v258, %v282
      %v289 = vadd.f32 %v259, %v283
      %v290 = vadd.f32 %v260, %v284
      %291 = vset.pattern.permute.xlu0 3
      %292 = vperm.xlu0 %291, %v215
      %v293 = vpop.permute.xlu0 %292
      %v295 = vmul.f32 %v293, %v227
      %v296 = vmul.f32 %v293, %v228
      %v297 = vmul.f32 %v293, %v229
      %v298 = vmul.f32 %v293, %v230
      %303 = vrot.lane.b32.xlu0 %v295, 110
      %v304 = vpop.permute.xlu0 %303
      %305 = vrot.lane.b32.xlu0 %v296, 110
      %v306 = vpop.permute.xlu0 %305
      %307 = vrot.lane.b32.xlu0 %v297, 110
      %v308 = vpop.permute.xlu0 %307
      %309 = vrot.lane.b32.xlu0 %v298, 110
      %v310 = vpop.permute.xlu0 %309
      %vm311 = vcmask 900096
      %v312 = vsel %vm311, %v304, %v306
      %v313 = vsel %vm311, %v306, %v308
      %v314 = vsel %vm311, %v308, %v310
      %v318 = vadd.f32 %v288, %v312
      %v319 = vadd.f32 %v289, %v313
      %v320 = vadd.f32 %v290, %v314
      %321 = vset.pattern.permute.xlu0 4
      %322 = vperm.xlu0 %321, %v215
      %v323 = vpop.permute.xlu0 %322
      %v325 = vmul.f32 %v323, %v227
      %v326 = vmul.f32 %v323, %v228
      %v327 = vmul.f32 %v323, %v229
      %v328 = vmul.f32 %v323, %v230
      %333 = vrot.lane.b32.xlu0 %v325, 109
      %v334 = vpop.permute.xlu0 %333
      %335 = vrot.lane.b32.xlu0 %v326, 109
      %v336 = vpop.permute.xlu0 %335
      %337 = vrot.lane.b32.xlu0 %v327, 109
      %v338 = vpop.permute.xlu0 %337
      %339 = vrot.lane.b32.xlu0 %v328, 109
      %v340 = vpop.permute.xlu0 %339
      %vm341 = vcmask 891904
      %v342 = vsel %vm341, %v334, %v336
      %v343 = vsel %vm341, %v336, %v338
      %v344 = vsel %vm341, %v338, %v340
      %v348 = vadd.f32 %v318, %v342
      %v349 = vadd.f32 %v319, %v343
      %v350 = vadd.f32 %v320, %v344
      %351 = vset.pattern.permute.xlu0 5
      %352 = vperm.xlu0 %351, %v215
      %v353 = vpop.permute.xlu0 %352
      %v355 = vmul.f32 %v353, %v227
      %v356 = vmul.f32 %v353, %v228
      %v357 = vmul.f32 %v353, %v229
      %v358 = vmul.f32 %v353, %v230
      %363 = vrot.lane.b32.xlu0 %v355, 108
      %v364 = vpop.permute.xlu0 %363
      %365 = vrot.lane.b32.xlu0 %v356, 108
      %v366 = vpop.permute.xlu0 %365
      %367 = vrot.lane.b32.xlu0 %v357, 108
      %v368 = vpop.permute.xlu0 %367
      %369 = vrot.lane.b32.xlu0 %v358, 108
      %v370 = vpop.permute.xlu0 %369
      %vm371 = vcmask 883712
      %v372 = vsel %vm371, %v364, %v366
      %v373 = vsel %vm371, %v366, %v368
      %v374 = vsel %vm371, %v368, %v370
      %v378 = vadd.f32 %v348, %v372
      %v379 = vadd.f32 %v349, %v373
      %v380 = vadd.f32 %v350, %v374
      %381 = vset.pattern.permute.xlu0 6
      %382 = vperm.xlu0 %381, %v215
      %v383 = vpop.permute.xlu0 %382
      %v385 = vmul.f32 %v383, %v227
      %v386 = vmul.f32 %v383, %v228
      %v387 = vmul.f32 %v383, %v229
      %v388 = vmul.f32 %v383, %v230
      %393 = vrot.lane.b32.xlu0 %v385, 92
      %v394 = vpop.permute.xlu0 %393
      %395 = vrot.lane.b32.xlu0 %v386, 92
      %v396 = vpop.permute.xlu0 %395
      %397 = vrot.lane.b32.xlu0 %v387, 92
      %v398 = vpop.permute.xlu0 %397
      %399 = vrot.lane.b32.xlu0 %v388, 92
      %v400 = vpop.permute.xlu0 %399
      %vm401 = vcmask 752640
      %v402 = vsel %vm401, %v394, %v396
      %v403 = vsel %vm401, %v396, %v398
      %v404 = vsel %vm401, %v398, %v400
      %v408 = vadd.f32 %v378, %v402
      %v409 = vadd.f32 %v379, %v403
      %v410 = vadd.f32 %v380, %v404
      %411 = vset.pattern.permute.xlu0 7
      %412 = vperm.xlu0 %411, %v215
      %v413 = vpop.permute.xlu0 %412
      %v415 = vmul.f32 %v413, %v227
      %v416 = vmul.f32 %v413, %v228
      %v417 = vmul.f32 %v413, %v229
      %v418 = vmul.f32 %v413, %v230
      %423 = vrot.lane.b32.xlu0 %v415, 91
      %v424 = vpop.permute.xlu0 %423
      %425 = vrot.lane.b32.xlu0 %v416, 91
      %v426 = vpop.permute.xlu0 %425
      %427 = vrot.lane.b32.xlu0 %v417, 91
      %v428 = vpop.permute.xlu0 %427
      %429 = vrot.lane.b32.xlu0 %v418, 91
      %v430 = vpop.permute.xlu0 %429
      %vm431 = vcmask 744448
      %v432 = vsel %vm431, %v424, %v426
      %v433 = vsel %vm431, %v426, %v428
      %v434 = vsel %vm431, %v428, %v430
      %v438 = vadd.f32 %v408, %v432
      %v439 = vadd.f32 %v409, %v433
      %v440 = vadd.f32 %v410, %v434
      %441 = vset.pattern.permute.xlu0 8
      %442 = vperm.xlu0 %441, %v215
      %v443 = vpop.permute.xlu0 %442
      %v445 = vmul.f32 %v443, %v227
      %v446 = vmul.f32 %v443, %v228
      %v447 = vmul.f32 %v443, %v229
      %v448 = vmul.f32 %v443, %v230
      %453 = vrot.lane.b32.xlu0 %v445, 90
      %v454 = vpop.permute.xlu0 %453
      %455 = vrot.lane.b32.xlu0 %v446, 90
      %v456 = vpop.permute.xlu0 %455
      %457 = vrot.lane.b32.xlu0 %v447, 90
      %v458 = vpop.permute.xlu0 %457
      %459 = vrot.lane.b32.xlu0 %v448, 90
      %v460 = vpop.permute.xlu0 %459
      %vm461 = vcmask 736256
      %v462 = vsel %vm461, %v454, %v456
      %v463 = vsel %vm461, %v456, %v458
      %v464 = vsel %vm461, %v458, %v460
      %v468 = vadd.f32 %v438, %v462
      %v469 = vadd.f32 %v439, %v463
      %v470 = vadd.f32 %v440, %v464
      %v471 = vld [vmem:[%s209] sm:$0xf]
      %v472 = vld [vmem:[%s3] sm:$0xf]
      %474 = vset.pattern.permute.xlu0 0
      %475 = vperm.xlu0 %474, %v472
      %v476 = vpop.permute.xlu0 %475
      %vm478 = vcmask 64512
      %v480 = vsel %vm478, %v471, 0
      %482 = vmatprep.subr.mxu0 %v469
      %483 = vmatpush1.msra.mxu0 %v468
      %484 = vmatprep.subr.mxu0 0.0
      %485 = vmatpush1.msra.mxu0 0.0
      %486 = vmatprep.subr.mxu0 0.0
      %487 = vmatpush1.msra.mxu0 0.0
      %488 = vmatprep.subr.mxu0 0.0
      %489 = vmatpush1.msra.mxu0 0.0
      %490 = vmatprep.subr.mxu0 0.0
      %491 = vmatpush1.msra.mxu0 0.0
      %492 = vmatprep.subr.mxu0 0.0
      %493 = vmatpush1.msra.mxu0 0.0
      %494 = vmatprep.subr.mxu0 0.0
      %495 = vmatpush1.msra.mxu0 0.0
      %496 = vmatprep.subr.mxu0 0.0
      %497 = vmatpush1.msra.mxu0 0.0
      %498 = vmatprep.subr.mxu0 0.0
      %499 = vmatpush1.msra.mxu0 0.0
      %500 = vmatprep.subr.mxu0 0.0
      %501 = vmatpush1.msra.mxu0 0.0
      %502 = vmatprep.subr.mxu0 0.0
      %503 = vmatpush1.msra.mxu0 0.0
      %504 = vmatprep.subr.mxu0 0.0
      %505 = vmatpush1.msra.mxu0 0.0
      %506 = vmatprep.subr.mxu0 0.0
      %507 = vmatpush1.msra.mxu0 0.0
      %508 = vmatprep.subr.mxu0 0.0
      %509 = vmatpush1.msra.mxu0 0.0
      %510 = vmatprep.subr.mxu0 0.0
      %511 = vmatpush1.msra.mxu0 0.0
      %512 = vmatprep.subr.mxu0 0.0
      %513 = vmatpush1.msra.mxu0 0.0
      %514 = vmatprep.subr.mxu0 0.0
      %515 = vmatpush1.msra.mxu0 0.0
      %516 = vmatprep.subr.mxu0 0.0
      %517 = vmatpush1.msra.mxu0 0.0
      %518 = vmatprep.subr.mxu0 0.0
      %519 = vmatpush1.msra.mxu0 0.0
      %520 = vmatprep.subr.mxu0 0.0
      %521 = vmatpush1.msra.mxu0 0.0
      %522 = vmatprep.subr.mxu0 0.0
      %523 = vmatpush1.msra.mxu0 0.0
      %524 = vmatprep.subr.mxu0 0.0
      %525 = vmatpush1.msra.mxu0 0.0
      %526 = vmatprep.subr.mxu0 0.0
      %527 = vmatpush1.msra.mxu0 0.0
      %528 = vmatprep.subr.mxu0 0.0
      %529 = vmatpush1.msra.mxu0 0.0
      %530 = vmatprep.subr.mxu0 0.0
      %531 = vmatpush1.msra.mxu0 0.0
      %532 = vmatprep.subr.mxu0 0.0
      %533 = vmatpush1.msra.mxu0 0.0
      %534 = vmatprep.subr.mxu0 0.0
      %535 = vmatpush1.msra.mxu0 0.0
      %536 = vmatprep.subr.mxu0 0.0
      %537 = vmatpush1.msra.mxu0 0.0
      %538 = vmatprep.subr.mxu0 0.0
      %539 = vmatpush1.msra.mxu0 0.0
      %540 = vmatprep.subr.mxu0 0.0
      %541 = vmatpush1.msra.mxu0 0.0
      %542 = vmatprep.subr.mxu0 0.0
      %543 = vmatpush1.msra.mxu0 0.0
      %544 = vmatprep.subr.mxu0 0.0
      %545 = vmatpush1.msra.mxu0 0.0
      %546 = vmatprep.mubr.f32.mxu0 0.0
      %547 = vmatmul.mubr.f32.gmra.mrb[0].mxu0 %v480
      %v548 = vpop.f32.mrb[0].mxu0
      %v549 = vadd.f32 %v476, %v548
      %v550 = vpop.f32.mrb[0].mxu0
      %v551 = vadd.f32 %v476, %v550
      %552 = vdwg.mxu0
      %553 = vmatprep.subr.mxu0 0.0
      %554 = vmatpush1.msra.mxu0 %v470
      %555 = vmatprep.subr.mxu0 0.0
      %556 = vmatpush1.msra.mxu0 0.0
      %557 = vmatprep.subr.mxu0 0.0
      %558 = vmatpush1.msra.mxu0 0.0
      %559 = vmatprep.subr.mxu0 0.0
      %560 = vmatpush1.msra.mxu0 0.0
      %561 = vmatprep.subr.mxu0 0.0
      %562 = vmatpush1.msra.mxu0 0.0
      %563 = vmatprep.subr.mxu0 0.0
      %564 = vmatpush1.msra.mxu0 0.0
      %565 = vmatprep.subr.mxu0 0.0
      %566 = vmatpush1.msra.mxu0 0.0
      %567 = vmatprep.subr.mxu0 0.0
      %568 = vmatpush1.msra.mxu0 0.0
      %569 = vmatprep.subr.mxu0 0.0
      %570 = vmatpush1.msra.mxu0 0.0
      %571 = vmatprep.subr.mxu0 0.0
      %572 = vmatpush1.msra.mxu0 0.0
      %573 = vmatprep.subr.mxu0 0.0
      %574 = vmatpush1.msra.mxu0 0.0
      %575 = vmatprep.subr.mxu0 0.0
      %576 = vmatpush1.msra.mxu0 0.0
      %577 = vmatprep.subr.mxu0 0.0
      %578 = vmatpush1.msra.mxu0 0.0
      %579 = vmatprep.subr.mxu0 0.0
      %580 = vmatpush1.msra.mxu0 0.0
      %581 = vmatprep.subr.mxu0 0.0
      %582 = vmatpush1.msra.mxu0 0.0
      %583 = vmatprep.subr.mxu0 0.0
      %584 = vmatpush1.msra.mxu0 0.0
      %585 = vmatprep.subr.mxu0 0.0
      %586 = vmatpush1.msra.mxu0 0.0
      %587 = vmatprep.subr.mxu0 0.0
      %588 = vmatpush1.msra.mxu0 0.0
      %589 = vmatprep.subr.mxu0 0.0
      %590 = vmatpush1.msra.mxu0 0.0
      %591 = vmatprep.subr.mxu0 0.0
      %592 = vmatpush1.msra.mxu0 0.0
      %593 = vmatprep.subr.mxu0 0.0
      %594 = vmatpush1.msra.mxu0 0.0
      %595 = vmatprep.subr.mxu0 0.0
      %596 = vmatpush1.msra.mxu0 0.0
      %597 = vmatprep.subr.mxu0 0.0
      %598 = vmatpush1.msra.mxu0 0.0
      %599 = vmatprep.subr.mxu0 0.0
      %600 = vmatpush1.msra.mxu0 0.0
      %601 = vmatprep.subr.mxu0 0.0
      %602 = vmatpush1.msra.mxu0 0.0
      %603 = vmatprep.subr.mxu0 0.0
      %604 = vmatpush1.msra.mxu0 0.0
      %605 = vmatprep.subr.mxu0 0.0
      %606 = vmatpush1.msra.mxu0 0.0
      %607 = vmatprep.subr.mxu0 0.0
      %608 = vmatpush1.msra.mxu0 0.0
      %609 = vmatprep.subr.mxu0 0.0
      %610 = vmatpush1.msra.mxu0 0.0
      %611 = vmatprep.subr.mxu0 0.0
      %612 = vmatpush1.msra.mxu0 0.0
      %613 = vmatprep.subr.mxu0 0.0
      %614 = vmatpush1.msra.mxu0 0.0
      %615 = vmatprep.subr.mxu0 0.0
      %616 = vmatpush1.msra.mxu0 0.0
      %617 = vmatprep.mubr.f32.mxu0 0.0
      %618 = vmatmul.mubr.f32.gmra.mrb[0].mxu0 %v480
      %v619 = vpop.f32.mrb[0].mxu0
      %v620 = vadd.f32 %v476, %v619
      %v621 = vpop.f32.mrb[0].mxu0
      %622 = vdwg.mxu0
      %v625 = vcombine.low %v549, %v551
      %627 = vst [vmem:[%s214] sm:$0xff] %v625
      %628 = vst [vmem:[%s214 + $0x8] sm:$0xf] %v620
      %p629 = scmp.lt.s32.totalorder %s15, 1
      %s630 = scalar_select %p629, %s15, 1
      %s631 = smul.addr %s630, 3
      %s632 = smul.addr %s631, 4
      %s633 = scalar_lea.vmem %s4, %s632
      // Predicated region
      $region37: #{_lambda_.1} parent=35 // pred_check
        %p634 = pneg %p127
      $region38: #{_lambda_.1} parent=35 // pred_check_branch
        %636 = sbr.rel (%p634) target = $region40
      $region39: #{_lambda_.1} parent=35 // pred_region
        _
      $region40: #{_lambda_.1} parent=35 // pred_fallthru
        _
    $region36: #{_lambda_.1} parent=5 // pred_fallthru
      _
    %p637 = scmp.le.s32.totalorder 2, %s10
    // Predicated region
    $region41: #{_lambda_.1} parent=5 // pred_check
      %p638 = pneg %p637
    $region42: #{_lambda_.1} parent=5 // pred_check_branch
      %640 = sbr.rel (%p638) target = $region44
    $region43: #{_lambda_.1} parent=5 // pred_region
      %s641 = ssub.s32 %s10, 2
      // Predicated region
      $region45: #{_lambda_.1} parent=43 // pred_check
        %p642 = pneg %p133
      $region46: #{_lambda_.1} parent=43 // pred_check_branch
        %644 = sbr.rel (%p642) target = $region48
      $region47: #{_lambda_.1} parent=43 // pred_region
        %p645 = scmp.lt.s32.totalorder %s16, 1
        %s646 = scalar_select %p645, %s16, 1
        %s647 = smul.addr %s646, 3
        %s648 = smul.addr %s647, 4
        %s649 = scalar_lea.vmem %s4, %s648
      $region48: #{_lambda_.1} parent=43 // pred_fallthru
        _
    $region44: #{_lambda_.1} parent=5 // pred_fallthru
      _
  $region6: #{_lambda_.1} parent=0 // loop_footer
    %s14 = sadd.s32 1, %s10
  $region7: #{_lambda_.1} parent=0 // loop_footer_branch
    %9 = sbr.rel target = $region3
  $region8: #{_lambda_.1} parent=0 // loop_exit
    _

</llo_original>
